<compile_context>
chip_gen: v5e
topology: v5e:2x2
jax: 0.10.0
libtpu: 0.0.40
codegen_flags: <defaults>
</compile_context>

<pallas_src>
import functools

import jax
import jax.numpy as jnp
from jax.experimental import pallas as pl
from jax.experimental.pallas import tpu as pltpu


_VMEM_LIMIT = 32 * 1024 * 1024              # explicit scoped-VMEM budget
_FUSED_HOPS_VMEM_BUDGET = 24 * 1024 * 1024  # leave headroom under the limit


# ----------------------------------------------------------------------------
# helpers
# ----------------------------------------------------------------------------
def _round_up(x, m):
    return ((x + m - 1) // m) * m


def _pick_row_tile(np_):
    """Largest row tile <= 512 that divides np_ (np_ is a multiple of 128),
    preferring >= 2 row tiles so both v7x TensorCores get work."""
    m = np_ // 128
    for d in (4, 3, 2, 1):
        if m % d == 0 and (m // d >= 2 or d == 1):
            return 128 * d
    return 128


def _hops_fit_vmem(np_, dp):
    """Conservative VMEM estimate for the fused-hops kernel:
    bf16 adj (double-buffered) + x0/h0/out (double-buffered) + scratch."""
    need = 4 * np_ * np_ + 26 * np_ * dp
    return need <= _FUSED_HOPS_VMEM_BUDGET


# ----------------------------------------------------------------------------
# kernels
# ----------------------------------------------------------------------------
def _fused_mlp_kernel(mw0_ref, x_ref, w1_ref, b1_ref, w2_ref, b2_ref,
                      x0_ref, h0_ref):
    """x0 = x @ W1 ->relu-> @ W2 + b2 ; h0 = mw[0] * x0.
    W1/W2 are full VMEM-resident blocks; grid is over node-row tiles only."""
    h1 = jnp.dot(x_ref[...], w1_ref[...], preferred_element_type=jnp.float32)
    h1 = jnp.maximum(h1 + b1_ref[...], 0.0)
    y = jnp.dot(h1.astype(w2_ref.dtype), w2_ref[...],
                preferred_element_type=jnp.float32) + b2_ref[...]
    x0_ref[...] = y.astype(x0_ref.dtype)                 # bf16 stream for hops
    h0_ref[...] = (mw0_ref[0] * y).astype(h0_ref.dtype)  # f32 hidden init


def _gpr_hops_kernel(mw_ref, adj_ref, x0_ref, h0_ref, out_ref, x_s, h_s):
    """All poly_order hops fused; adj / x / hidden stay resident in VMEM.
    grid = (poly_order,)."""
    k = pl.program_id(0)

    @pl.when(k == 0)
    def _init():
        x_s[...] = x0_ref[...]
        h_s[...] = h0_ref[...]

    xn = jnp.dot(adj_ref[...], x_s[...], preferred_element_type=jnp.float32)
    h_s[...] = h_s[...] + mw_ref[k + 1] * xn
    x_s[...] = xn.astype(x_s.dtype)

    @pl.when(k == pl.num_programs(0) - 1)
    def _finalize():
        out_ref[...] = h_s[...].astype(out_ref.dtype)


def _gpr_step_kernel(gamma_ref, adj_ref, x_ref, h_ref, xn_ref, hn_ref, acc_ref):
    """Streaming fallback, one hop: xn = adj @ x ; hn = h + gamma * xn.
    grid = (row tiles, reduction tiles)."""
    @pl.when(pl.program_id(1) == 0)
    def _init():
        acc_ref[...] = jnp.zeros_like(acc_ref)

    acc_ref[...] += jnp.dot(adj_ref[...], x_ref[...],
                            preferred_element_type=jnp.float32)

    @pl.when(pl.program_id(1) == pl.num_programs(1) - 1)
    def _finalize():
        xn = acc_ref[...]
        xn_ref[...] = xn.astype(xn_ref.dtype)
        hn_ref[...] = (h_ref[...] + gamma_ref[0] * xn).astype(hn_ref.dtype)


def _gpr_last_kernel(gamma_ref, adj_ref, x_ref, h_ref, hn_ref, acc_ref):
    """Streaming fallback, last hop: the propagated x is discarded."""
    @pl.when(pl.program_id(1) == 0)
    def _init():
        acc_ref[...] = jnp.zeros_like(acc_ref)

    acc_ref[...] += jnp.dot(adj_ref[...], x_ref[...],
                            preferred_element_type=jnp.float32)

    @pl.when(pl.program_id(1) == pl.num_programs(1) - 1)
    def _finalize():
        hn_ref[...] = (h_ref[...] + gamma_ref[0] * acc_ref[...]).astype(hn_ref.dtype)


# ----------------------------------------------------------------------------
# pallas_call wrappers
# ----------------------------------------------------------------------------
def _fused_mlp(mw0, x, w1, b1, w2, b2, *, tm):
    Np, Fp = x.shape
    Hp = w1.shape[1]
    Dp = w2.shape[1]
    grid = (Np // tm,)
    return pl.pallas_call(
        _fused_mlp_kernel,
        out_shape=(jax.ShapeDtypeStruct((Np, Dp), jnp.bfloat16),
                   jax.ShapeDtypeStruct((Np, Dp), jnp.float32)),
        grid_spec=pltpu.PrefetchScalarGridSpec(
            num_scalar_prefetch=0,
            grid=grid,
            in_specs=[
                pl.BlockSpec(memory_space=pltpu.MemorySpace.SMEM),   # mw[0]
                pl.BlockSpec((tm, Fp), lambda i: (i, 0)),            # feature
                pl.BlockSpec((Fp, Hp), lambda i: (0, 0)),            # W1 resident
                pl.BlockSpec((1, Hp), lambda i: (0, 0)),             # b1
                pl.BlockSpec((Hp, Dp), lambda i: (0, 0)),            # W2 resident
                pl.BlockSpec((1, Dp), lambda i: (0, 0)),             # b2
            ],
            out_specs=(pl.BlockSpec((tm, Dp), lambda i: (i, 0)),
                       pl.BlockSpec((tm, Dp), lambda i: (i, 0))),
        ),
        compiler_params=pltpu.CompilerParams(
            dimension_semantics=("parallel",),
            vmem_limit_bytes=_VMEM_LIMIT),
        cost_estimate=pl.CostEstimate(
            flops=2 * Np * (Fp * Hp + Hp * Dp) + 2 * Np * Dp,
            transcendentals=0,
            bytes_accessed=2 * (Np * Fp + Fp * Hp + Hp * Dp + Np * Dp)
                           + 4 * (Hp + Dp + Np * Dp)),
    )(mw0, x, w1, b1, w2, b2)


def _gpr_fused_hops(mw, adj, x0, h0, *, poly_order):
    Np = adj.shape[0]
    Dp = x0.shape[1]
    return pl.pallas_call(
        _gpr_hops_kernel,
        out_shape=jax.ShapeDtypeStruct((Np, Dp), jnp.float32),
        grid_spec=pltpu.PrefetchScalarGridSpec(
            num_scalar_prefetch=0,
            grid=(poly_order,),
            in_specs=[
                pl.BlockSpec(memory_space=pltpu.MemorySpace.SMEM),   # mw
                pl.BlockSpec((Np, Np), lambda k: (0, 0)),            # adj resident
                pl.BlockSpec((Np, Dp), lambda k: (0, 0)),            # x0
                pl.BlockSpec((Np, Dp), lambda k: (0, 0)),            # hidden0
            ],
            out_specs=pl.BlockSpec((Np, Dp), lambda k: (0, 0)),
            scratch_shapes=[pltpu.VMEM((Np, Dp), jnp.bfloat16),
                            pltpu.VMEM((Np, Dp), jnp.float32)],
        ),
        compiler_params=pltpu.CompilerParams(
            dimension_semantics=("arbitrary",),
            vmem_limit_bytes=_VMEM_LIMIT),
        cost_estimate=pl.CostEstimate(
            flops=poly_order * (2 * Np * Np * Dp + 2 * Np * Dp),
            transcendentals=0,
            bytes_accessed=2 * (Np * Np + Np * Dp) + 4 * 2 * Np * Dp),
    )(mw, adj, x0, h0)


def _gpr_stream_step(gamma, adj, x, hidden, *, tm, tk, last):
    Np = adj.shape[0]
    Dp = x.shape[1]
    grid = (Np // tm, Np // tk)
    in_specs = [
        pl.BlockSpec(memory_space=pltpu.MemorySpace.SMEM),           # gamma
        pl.BlockSpec((tm, tk), lambda i, k: (i, k)),                 # adj
        pl.BlockSpec((tk, Dp), lambda i, k: (k, 0)),                 # x (bf16)
        pl.BlockSpec((tm, Dp), lambda i, k: (i, 0)),                 # hidden (f32)
    ]
    if last:
        kernel = _gpr_last_kernel
        out_shape = jax.ShapeDtypeStruct((Np, Dp), jnp.float32)
        out_specs = pl.BlockSpec((tm, Dp), lambda i, k: (i, 0))
        io_alias = {3: 0}          # hidden -> hn (in-place update)
    else:
        kernel = _gpr_step_kernel
        out_shape = (jax.ShapeDtypeStruct((Np, Dp), jnp.bfloat16),
                     jax.ShapeDtypeStruct((Np, Dp), jnp.float32))
        out_specs = (pl.BlockSpec((tm, Dp), lambda i, k: (i, 0)),
                     pl.BlockSpec((tm, Dp), lambda i, k: (i, 0)))
        io_alias = {3: 1}          # hidden -> hn (in-place update)
    return pl.pallas_call(
        kernel,
        out_shape=out_shape,
        grid_spec=pltpu.PrefetchScalarGridSpec(
            num_scalar_prefetch=0,
            grid=grid,
            in_specs=in_specs,
            out_specs=out_specs,
            scratch_shapes=[pltpu.VMEM((tm, Dp), jnp.float32)],
        ),
        compiler_params=pltpu.CompilerParams(
            dimension_semantics=("parallel", "arbitrary"),
            vmem_limit_bytes=_VMEM_LIMIT),
        input_output_aliases=io_alias,
        cost_estimate=pl.CostEstimate(
            flops=2 * Np * Np * Dp + 2 * Np * Dp,
            transcendentals=0,
            bytes_accessed=2 * Np * Np + 4 * Np * Dp + 8 * Np * Dp),
    )(gamma, adj, x, hidden)


# ----------------------------------------------------------------------------
# forward pass
# ----------------------------------------------------------------------------
def sim2layer_gpr_forward(feature, adj, W1, b1, W2, b2, message_weight,
                          *, poly_order, force_streaming_hops=False):
    """feature: [N,F], adj: [N,N] dense, W1:[F,H], b1:[H], W2:[H,D], b2:[D],
    message_weight: [poly_order+1].  Returns hidden: [N, D]."""
    # TODO(synk): dropout layers are identity here (eval/inference mode);
    # training-mode dropout would need pltpu.prng_* masks.
    N, F = feature.shape
    H = W1.shape[1]
    D = W2.shape[1]

    Np = _round_up(N, 128)      # node rows (also adj lane dim)
    Fp = _round_up(F, 128)
    Hp = _round_up(H, 128)
    Dp = _round_up(D, 128)
    tm = _pick_row_tile(Np)

    cd = jnp.bfloat16           # streamed operand dtype (f32 accumulation)

    x = jnp.pad(feature.astype(jnp.float32), ((0, Np - N), (0, Fp - F))).astype(cd)
    a = jnp.pad(adj.astype(jnp.float32), ((0, Np - N), (0, Np - N))).astype(cd)
    w1 = jnp.pad(W1.astype(jnp.float32), ((0, Fp - F), (0, Hp - H))).astype(cd)
    w2 = jnp.pad(W2.astype(jnp.float32), ((0, Hp - H), (0, Dp - D))).astype(cd)
    b1p = jnp.pad(b1.astype(jnp.float32), (0, Hp - H)).reshape(1, Hp)
    b2p = jnp.pad(b2.astype(jnp.float32), (0, Dp - D)).reshape(1, Dp)
    mw = message_weight.astype(jnp.float32)

    # fused fc1 + relu + fc2 + hidden0 (W1/W2 VMEM-resident, no HBM round trip
    # for the fc1 intermediate)
    x0, h0 = _fused_mlp(mw[0:1], x, w1, b1p, w2, b2p, tm=tm)

    if poly_order == 0:
        hidden = h0
    elif (not force_streaming_hops) and _hops_fit_vmem(Np, Dp):
        # all hops in one kernel; adjacency streamed from HBM exactly once
        hidden = _gpr_fused_hops(mw, a, x0, h0, poly_order=poly_order)
    else:
        # streaming fallback for large graphs; one tiled kernel per hop
        xk, hk = x0, h0
        for k in range(poly_order):
            gamma = mw[k + 1:k + 2]
            if k + 1 < poly_order:
                xk, hk = _gpr_stream_step(gamma, a, xk, hk, tm=tm, tk=tm,
                                          last=False)
            else:
                hk = _gpr_stream_step(gamma, a, xk, hk, tm=tm, tk=tm,
                                      last=True)
        hidden = hk

    # TODO(synk): query_edges gather + concat + final nn.Linear branch not
    # implemented (module default query_edges=None returns `hidden`).
    return hidden[:N, :D]


# ----------------------------------------------------------------------------
# pure-JAX reference (f32, highest precision)
# ----------------------------------------------------------------------------
def reference(feature, adj, W1, b1, W2, b2, mw, poly_order):
    hp = jax.lax.Precision.HIGHEST
    x = jnp.maximum(jnp.dot(feature, W1, precision=hp) + b1, 0.0)
    x = jnp.dot(x, W2, precision=hp) + b2
    hidden = x * mw[0]
    for k in range(poly_order):
        x = jnp.dot(adj, x, precision=hp)
        hidden = hidden + mw[k + 1] * x
    return hidden


# ----------------------------------------------------------------------------
# test
# ----------------------------------------------------------------------------
if __name__ == "__main__":
    gpr_alpha = 0.1
    poly_order = 3
    feat_dim = 32
    hidden_dim = 64
    output_dim = 16
    num_nodes = 20

    key = jax.random.PRNGKey(0)
    kf, ka, k1, kb1, k2, kb2 = jax.random.split(key, 6)

    feature = jax.random.normal(kf, (num_nodes, feat_dim), jnp.float32)

    # dense, row-normalized adjacency (self-loops included)
    araw = jax.random.uniform(ka, (num_nodes, num_nodes), jnp.float32)
    araw = 0.5 * (araw + araw.T) + jnp.eye(num_nodes, dtype=jnp.float32)
    adj = araw / jnp.sum(araw, axis=1, keepdims=True)

    def linear_init(kw, fan_in, shape):
        bound = (1.0 / fan_in) ** 0.5
        return jax.random.uniform(kw, shape, jnp.float32, -bound, bound)

    # weights stored as [in, out] so forward is x @ W + b (== torch nn.Linear)
    W1 = linear_init(k1, feat_dim, (feat_dim, hidden_dim))
    b1 = linear_init(kb1, feat_dim, (hidden_dim,))
    W2 = linear_init(k2, hidden_dim, (hidden_dim, output_dim))
    b2 = linear_init(kb2, hidden_dim, (output_dim,))

    # message_weight exactly as the module's reset_parameters()
    mw = gpr_alpha * (1.0 - gpr_alpha) ** jnp.arange(poly_order + 1,
                                                     dtype=jnp.float32)
    mw = mw.at[-1].set((1.0 - gpr_alpha) ** poly_order)

    ref = reference(feature, adj, W1, b1, W2, b2, mw, poly_order)

    # fused-hops path (adjacency resident in VMEM)
    fwd = jax.jit(functools.partial(sim2layer_gpr_forward,
                                    poly_order=poly_order))
    out = jax.block_until_ready(fwd(feature, adj, W1, b1, W2, b2, mw))

    # streaming fallback path (per-hop tiled kernels)
    fwd_stream = jax.jit(functools.partial(sim2layer_gpr_forward,
                                           poly_order=poly_order,
                                           force_streaming_hops=True))
    out_s = jax.block_until_ready(fwd_stream(feature, adj, W1, b1, W2, b2, mw))

    assert out.shape == (num_nodes, output_dim)
    assert out_s.shape == (num_nodes, output_dim)
    # bf16 streamed operands with f32 accumulation -> relaxed tolerance vs the
    # f32 HIGHEST-precision reference.
    assert jnp.allclose(out, ref, atol=5e-2, rtol=5e-2), \
        float(jnp.max(jnp.abs(out - ref)))
    assert jnp.allclose(out_s, ref, atol=5e-2, rtol=5e-2), \
        float(jnp.max(jnp.abs(out_s - ref)))

    print("KERNEL_OK")
</pallas_src>

<mosaic_0001>
module attributes {stable_mosaic.version = 11 : i64} {
  func.func @_fused_mlp_kernel(%arg0: i32, %arg1: memref<1xf32, #tpu.memory_space<smem>>, %arg2: memref<128x128xbf16, #tpu.memory_space<vmem>>, %arg3: memref<128x128xbf16, #tpu.memory_space<vmem>>, %arg4: memref<1x128xf32, #tpu.memory_space<vmem>>, %arg5: memref<128x128xbf16, #tpu.memory_space<vmem>>, %arg6: memref<1x128xf32, #tpu.memory_space<vmem>>, %arg7: memref<128x128xbf16, #tpu.memory_space<vmem>>, %arg8: memref<128x128xf32, #tpu.memory_space<vmem>>) attributes {dimension_semantics = [#tpu.dimension_semantics<parallel>], iteration_bounds = array<i64: 1>, scalar_prefetch = 0 : i64, scratch_operands = 0 : i64, tpu.core_type = #tpu.core_type<tc>, window_params = [{transform_indices = @transform_0, window_bounds = array<i64: 1>}, {transform_indices = @transform_1, window_bounds = array<i64: 128, 128>}, {pipeline_mode = #tpu.pipeline_mode<synchronous>, transform_indices = @transform_2, window_bounds = array<i64: 128, 128>}, {pipeline_mode = #tpu.pipeline_mode<synchronous>, transform_indices = @transform_3, window_bounds = array<i64: 1, 128>}, {pipeline_mode = #tpu.pipeline_mode<synchronous>, transform_indices = @transform_4, window_bounds = array<i64: 128, 128>}, {pipeline_mode = #tpu.pipeline_mode<synchronous>, transform_indices = @transform_5, window_bounds = array<i64: 1, 128>}, {transform_indices = @transform_6, window_bounds = array<i64: 128, 128>}, {transform_indices = @transform_7, window_bounds = array<i64: 128, 128>}]} {
    %c0 = arith.constant 0 : index
    %c0_0 = arith.constant 0 : index
    %0 = vector.load %arg2[%c0, %c0_0] : memref<128x128xbf16, #tpu.memory_space<vmem>>, vector<128x128xbf16>
    %c0_1 = arith.constant 0 : index
    %c0_2 = arith.constant 0 : index
    %1 = vector.load %arg3[%c0_1, %c0_2] : memref<128x128xbf16, #tpu.memory_space<vmem>>, vector<128x128xbf16>
    %cst = arith.constant dense<0.000000e+00> : vector<128x128xf32>
    %2 = tpu.matmul %0, %1, %cst {dimension_numbers = #tpu.dot_dimension_numbers<[1], [0], [0], [1], [0, 0, 1, 1], [], []>} : vector<128x128xbf16>, vector<128x128xbf16>, vector<128x128xf32> -> vector<128x128xf32>
    %c0_3 = arith.constant 0 : index
    %c0_4 = arith.constant 0 : index
    %3 = vector.load %arg4[%c0_3, %c0_4] : memref<1x128xf32, #tpu.memory_space<vmem>>, vector<1x128xf32>
    %4 = vector.broadcast %3 : vector<1x128xf32> to vector<128x128xf32>
    %5 = arith.addf %2, %4 : vector<128x128xf32>
    %cst_5 = arith.constant 0.000000e+00 : f32
    %6 = vector.broadcast %cst_5 : f32 to vector<128x128xf32>
    %7 = arith.maximumf %5, %6 : vector<128x128xf32>
    %8 = arith.truncf %7 : vector<128x128xf32> to vector<128x128xbf16>
    %c0_6 = arith.constant 0 : index
    %c0_7 = arith.constant 0 : index
    %9 = vector.load %arg5[%c0_6, %c0_7] : memref<128x128xbf16, #tpu.memory_space<vmem>>, vector<128x128xbf16>
    %cst_8 = arith.constant dense<0.000000e+00> : vector<128x128xf32>
    %10 = tpu.matmul %8, %9, %cst_8 {dimension_numbers = #tpu.dot_dimension_numbers<[1], [0], [0], [1], [0, 0, 1, 1], [], []>} : vector<128x128xbf16>, vector<128x128xbf16>, vector<128x128xf32> -> vector<128x128xf32>
    %c0_9 = arith.constant 0 : index
    %c0_10 = arith.constant 0 : index
    %11 = vector.load %arg6[%c0_9, %c0_10] : memref<1x128xf32, #tpu.memory_space<vmem>>, vector<1x128xf32>
    %12 = vector.broadcast %11 : vector<1x128xf32> to vector<128x128xf32>
    %13 = arith.addf %10, %12 : vector<128x128xf32>
    %14 = arith.truncf %13 : vector<128x128xf32> to vector<128x128xbf16>
    %c0_11 = arith.constant 0 : index
    %c0_12 = arith.constant 0 : index
    %15 = vector.load %arg7[%c0_11, %c0_12] : memref<128x128xbf16, #tpu.memory_space<vmem>>, vector<128x128xbf16>
    tpu.vector_store %arg7[%c0_11, %c0_12], %14 {strides = array<i32>} : memref<128x128xbf16, #tpu.memory_space<vmem>>, vector<128x128xbf16>,
    %c0_13 = arith.constant 0 : index
    %16 = memref.load %arg1[%c0_13] : memref<1xf32, #tpu.memory_space<smem>>
    %17 = vector.broadcast %16 : f32 to vector<128x128xf32>
    %18 = arith.mulf %17, %13 : vector<128x128xf32>
    %c0_14 = arith.constant 0 : index
    %c0_15 = arith.constant 0 : index
    %19 = vector.load %arg8[%c0_14, %c0_15] : memref<128x128xf32, #tpu.memory_space<vmem>>, vector<128x128xf32>
    tpu.vector_store %arg8[%c0_14, %c0_15], %18 {strides = array<i32>} : memref<128x128xf32, #tpu.memory_space<vmem>>, vector<128x128xf32>,
    return
  }
  func.func @transform_0(%arg0: i32) -> i32 {
    %c0_i32 = arith.constant 0 : i32
    %c0_i32_0 = arith.constant 0 : i32
    return %c0_i32 : i32
  }
  func.func @transform_1(%arg0: i32) -> (i32, i32) {
    %c0_i32 = arith.constant 0 : i32
    %c0_i32_0 = arith.constant 0 : i32
    return %arg0, %c0_i32 : i32, i32
  }
  func.func @transform_2(%arg0: i32) -> (i32, i32) {
    %c0_i32 = arith.constant 0 : i32
    %c0_i32_0 = arith.constant 0 : i32
    %c0_i32_1 = arith.constant 0 : i32
    return %c0_i32, %c0_i32_0 : i32, i32
  }
  func.func @transform_3(%arg0: i32) -> (i32, i32) {
    %c0_i32 = arith.constant 0 : i32
    %c0_i32_0 = arith.constant 0 : i32
    %c0_i32_1 = arith.constant 0 : i32
    return %c0_i32, %c0_i32_0 : i32, i32
  }
  func.func @transform_4(%arg0: i32) -> (i32, i32) {
    %c0_i32 = arith.constant 0 : i32
    %c0_i32_0 = arith.constant 0 : i32
    %c0_i32_1 = arith.constant 0 : i32
    return %c0_i32, %c0_i32_0 : i32, i32
  }
  func.func @transform_5(%arg0: i32) -> (i32, i32) {
    %c0_i32 = arith.constant 0 : i32
    %c0_i32_0 = arith.constant 0 : i32
    %c0_i32_1 = arith.constant 0 : i32
    return %c0_i32, %c0_i32_0 : i32, i32
  }
  func.func @transform_6(%arg0: i32) -> (i32, i32) {
    %c0_i32 = arith.constant 0 : i32
    %c0_i32_0 = arith.constant 0 : i32
    return %arg0, %c0_i32 : i32, i32
  }
  func.func @transform_7(%arg0: i32) -> (i32, i32) {
    %c0_i32 = arith.constant 0 : i32
    %c0_i32_0 = arith.constant 0 : i32
    return %arg0, %c0_i32 : i32, i32
  }
}

module attributes {stable_mosaic.version = 11 : i64} {
  func.func @_gpr_hops_kernel(%arg0: i32, %arg1: memref<4xf32, #tpu.memory_space<smem>>, %arg2: memref<128x128xbf16, #tpu.memory_space<vmem>>, %arg3: memref<128x128xbf16, #tpu.memory_space<vmem>>, %arg4: memref<128x128xf32, #tpu.memory_space<vmem>>, %arg5: memref<128x128xf32, #tpu.memory_space<vmem>>, %arg6: memref<128x128xbf16, #tpu.memory_space<vmem>>, %arg7: memref<128x128xf32, #tpu.memory_space<vmem>>) attributes {dimension_semantics = [#tpu.dimension_semantics<arbitrary>], iteration_bounds = array<i64: 3>, scalar_prefetch = 0 : i64, scratch_operands = 2 : i64, tpu.core_type = #tpu.core_type<tc>, window_params = [{transform_indices = @transform_0, window_bounds = array<i64: 4>}, {pipeline_mode = #tpu.pipeline_mode<synchronous>, transform_indices = @transform_1, window_bounds = array<i64: 128, 128>}, {pipeline_mode = #tpu.pipeline_mode<synchronous>, transform_indices = @transform_2, window_bounds = array<i64: 128, 128>}, {pipeline_mode = #tpu.pipeline_mode<synchronous>, transform_indices = @transform_3, window_bounds = array<i64: 128, 128>}, {pipeline_mode = #tpu.pipeline_mode<synchronous>, transform_indices = @transform_4, window_bounds = array<i64: 128, 128>}]} {
    %c0_i32 = arith.constant 0 : i32
    %0 = arith.cmpi eq, %arg0, %c0_i32 : i32
    %1 = arith.extui %0 : i1 to i32
    %c0_i32_0 = arith.constant 0 : i32
    %2 = arith.cmpi ne, %1, %c0_i32_0 : i32
    scf.if %2 {
      %c0_11 = arith.constant 0 : index
      %c0_12 = arith.constant 0 : index
      %19 = vector.load %arg3[%c0_11, %c0_12] : memref<128x128xbf16, #tpu.memory_space<vmem>>, vector<128x128xbf16>
      %c0_13 = arith.constant 0 : index
      %c0_14 = arith.constant 0 : index
      %20 = vector.load %arg6[%c0_13, %c0_14] : memref<128x128xbf16, #tpu.memory_space<vmem>>, vector<128x128xbf16>
      tpu.vector_store %arg6[%c0_13, %c0_14], %19 {strides = array<i32>} : memref<128x128xbf16, #tpu.memory_space<vmem>>, vector<128x128xbf16>,
      %c0_15 = arith.constant 0 : index
      %c0_16 = arith.constant 0 : index
      %21 = vector.load %arg4[%c0_15, %c0_16] : memref<128x128xf32, #tpu.memory_space<vmem>>, vector<128x128xf32>
      %c0_17 = arith.constant 0 : index
      %c0_18 = arith.constant 0 : index
      %22 = vector.load %arg7[%c0_17, %c0_18] : memref<128x128xf32, #tpu.memory_space<vmem>>, vector<128x128xf32>
      tpu.vector_store %arg7[%c0_17, %c0_18], %21 {strides = array<i32>} : memref<128x128xf32, #tpu.memory_space<vmem>>, vector<128x128xf32>,
    } else {
    }
    %c0 = arith.constant 0 : index
    %c0_1 = arith.constant 0 : index
    %3 = vector.load %arg2[%c0, %c0_1] : memref<128x128xbf16, #tpu.memory_space<vmem>>, vector<128x128xbf16>
    %c0_2 = arith.constant 0 : index
    %c0_3 = arith.constant 0 : index
    %4 = vector.load %arg6[%c0_2, %c0_3] : memref<128x128xbf16, #tpu.memory_space<vmem>>, vector<128x128xbf16>
    %cst = arith.constant dense<0.000000e+00> : vector<128x128xf32>
    %5 = tpu.matmul %3, %4, %cst {dimension_numbers = #tpu.dot_dimension_numbers<[1], [0], [0], [1], [0, 0, 1, 1], [], []>} : vector<128x128xbf16>, vector<128x128xbf16>, vector<128x128xf32> -> vector<128x128xf32>
    %c0_4 = arith.constant 0 : index
    %c0_5 = arith.constant 0 : index
    %6 = vector.load %arg7[%c0_4, %c0_5] : memref<128x128xf32, #tpu.memory_space<vmem>>, vector<128x128xf32>
    %c1_i32 = arith.constant 1 : i32
    %7 = arith.addi %arg0, %c1_i32 : i32
    %8 = arith.index_cast %7 : i32 to index
    %9 = memref.load %arg1[%8] : memref<4xf32, #tpu.memory_space<smem>>
    %10 = vector.broadcast %9 : f32 to vector<128x128xf32>
    %11 = arith.mulf %10, %5 : vector<128x128xf32>
    %12 = arith.addf %6, %11 : vector<128x128xf32>
    %c0_6 = arith.constant 0 : index
    %c0_7 = arith.constant 0 : index
    %13 = vector.load %arg7[%c0_6, %c0_7] : memref<128x128xf32, #tpu.memory_space<vmem>>, vector<128x128xf32>
    tpu.vector_store %arg7[%c0_6, %c0_7], %12 {strides = array<i32>} : memref<128x128xf32, #tpu.memory_space<vmem>>, vector<128x128xf32>,
    %14 = arith.truncf %5 : vector<128x128xf32> to vector<128x128xbf16>
    %c0_8 = arith.constant 0 : index
    %c0_9 = arith.constant 0 : index
    %15 = vector.load %arg6[%c0_8, %c0_9] : memref<128x128xbf16, #tpu.memory_space<vmem>>, vector<128x128xbf16>
    tpu.vector_store %arg6[%c0_8, %c0_9], %14 {strides = array<i32>} : memref<128x128xbf16, #tpu.memory_space<vmem>>, vector<128x128xbf16>,
    %c2_i32 = arith.constant 2 : i32
    %16 = arith.cmpi eq, %arg0, %c2_i32 : i32
    %17 = arith.extui %16 : i1 to i32
    %c0_i32_10 = arith.constant 0 : i32
    %18 = arith.cmpi ne, %17, %c0_i32_10 : i32
    scf.if %18 {
      %c0_11 = arith.constant 0 : index
      %c0_12 = arith.constant 0 : index
      %19 = vector.load %arg7[%c0_11, %c0_12] : memref<128x128xf32, #tpu.memory_space<vmem>>, vector<128x128xf32>
      %c0_13 = arith.constant 0 : index
      %c0_14 = arith.constant 0 : index
      %20 = vector.load %arg5[%c0_13, %c0_14] : memref<128x128xf32, #tpu.memory_space<vmem>>, vector<128x128xf32>
      tpu.vector_store %arg5[%c0_13, %c0_14], %19 {strides = array<i32>} : memref<128x128xf32, #tpu.memory_space<vmem>>, vector<128x128xf32>,
    } else {
    }
    return
  }
  func.func @transform_0(%arg0: i32) -> i32 {
    %c0_i32 = arith.constant 0 : i32
    %c0_i32_0 = arith.constant 0 : i32
    return %c0_i32 : i32
  }
  func.func @transform_1(%arg0: i32) -> (i32, i32) {
    %c0_i32 = arith.constant 0 : i32
    %c0_i32_0 = arith.constant 0 : i32
    %c0_i32_1 = arith.constant 0 : i32
    return %c0_i32, %c0_i32_0 : i32, i32
  }
  func.func @transform_2(%arg0: i32) -> (i32, i32) {
    %c0_i32 = arith.constant 0 : i32
    %c0_i32_0 = arith.constant 0 : i32
    %c0_i32_1 = arith.constant 0 : i32
    return %c0_i32, %c0_i32_0 : i32, i32
  }
  func.func @transform_3(%arg0: i32) -> (i32, i32) {
    %c0_i32 = arith.constant 0 : i32
    %c0_i32_0 = arith.constant 0 : i32
    %c0_i32_1 = arith.constant 0 : i32
    return %c0_i32, %c0_i32_0 : i32, i32
  }
  func.func @transform_4(%arg0: i32) -> (i32, i32) {
    %c0_i32 = arith.constant 0 : i32
    %c0_i32_0 = arith.constant 0 : i32
    %c0_i32_1 = arith.constant 0 : i32
    return %c0_i32, %c0_i32_0 : i32, i32
  }
}

</mosaic_0001>

<llo_original>
// kernel: sim2layer_gpr_forward.2
$region0: #{sim2layer_gpr_forward.2}
  #allocation0 [shape = 'u32[]', space=smem, size = 0x4, offset = 0x4, fixed_abs, tag = 'smem constant byte address 0x4 - core index']
  #allocation1 [shape = 'u32[72,128]{1,0:T(1,128)}', space=vmem, size = 0x9000, scoped, tag = 'internal scratch']
  #allocation2 [shape = 'f32[1]{0:T(128)S(6)}', space=smem, size = 0x200, scoped, tag = 'scoped memory for sim2layer_gpr_forward.2']
  %s0 = inlined_call_operand.<no memory space> [shape: f32[1], index: 0, kind: input, shape index: {}]
  %s1 = inlined_call_operand.vmem [shape: bf16[128,128], index: 1, kind: input, shape index: {}]
  %s2 = inlined_call_operand.vmem [shape: bf16[128,128], index: 2, kind: input, shape index: {}]
  %s3 = inlined_call_operand.vmem [shape: f32[1,128], index: 3, kind: input, shape index: {}]
  %s4 = inlined_call_operand.vmem [shape: bf16[128,128], index: 4, kind: input, shape index: {}]
  %s5 = inlined_call_operand.vmem [shape: f32[1,128], index: 5, kind: input, shape index: {}]
  %s6 = inlined_call_operand.vmem [shape: bf16[128,128], index: 6, kind: output, shape index: {0}]
  %s7 = inlined_call_operand.vmem [shape: f32[128,128], index: 7, kind: output, shape index: {1}]
  %8 = xla_tuple %s6, %s7
  %s9 = sld [smem:[#allocation0]]
  $region42: #{sim2layer_gpr_forward.2} parent=0
    _
  %s11 = ssub.s32 1, %s9
  %s12 = scalar_select 0, %s11, %s9
  %13 = sst [smem:[#allocation2]] %s0
  // Predicated region
  $region2: #{sim2layer_gpr_forward.2} parent=0 // pred_check
    _
  $region3: #{sim2layer_gpr_forward.2} parent=0 // pred_check_branch
    %15 = sbr.rel (0) target = $region5
  $region4: #{sim2layer_gpr_forward.2} parent=0 // pred_region
    _
  $region5: #{sim2layer_gpr_forward.2} parent=0 // pred_fallthru
    _
  // Predicated region
  $region6: #{sim2layer_gpr_forward.2} parent=0 // pred_check
    _
  $region7: #{sim2layer_gpr_forward.2} parent=0 // pred_check_branch
    %17 = sbr.rel (0) target = $region9
  $region8: #{sim2layer_gpr_forward.2} parent=0 // pred_region
    _
  $region9: #{sim2layer_gpr_forward.2} parent=0 // pred_fallthru
    _
  // Predicated region
  $region10: #{sim2layer_gpr_forward.2} parent=0 // pred_check
    _
  $region11: #{sim2layer_gpr_forward.2} parent=0 // pred_check_branch
    %19 = sbr.rel (0) target = $region13
  $region12: #{sim2layer_gpr_forward.2} parent=0 // pred_region
    _
  $region13: #{sim2layer_gpr_forward.2} parent=0 // pred_fallthru
    _
  // Predicated region
  $region14: #{sim2layer_gpr_forward.2} parent=0 // pred_check
    _
  $region15: #{sim2layer_gpr_forward.2} parent=0 // pred_check_branch
    %21 = sbr.rel (0) target = $region17
  $region16: #{sim2layer_gpr_forward.2} parent=0 // pred_region
    _
  $region17: #{sim2layer_gpr_forward.2} parent=0 // pred_fallthru
    _
  // Predicated region
  $region18: #{sim2layer_gpr_forward.2} parent=0 // pred_check
    _
  $region19: #{sim2layer_gpr_forward.2} parent=0 // pred_check_branch
    %23 = sbr.rel (0) target = $region21
  $region20: #{sim2layer_gpr_forward.2} parent=0 // pred_region
    _
  $region21: #{sim2layer_gpr_forward.2} parent=0 // pred_fallthru
    _
  // Predicated region
  $region22: #{sim2layer_gpr_forward.2} parent=0 // pred_check
    _
  $region23: #{sim2layer_gpr_forward.2} parent=0 // pred_check_branch
    %25 = sbr.rel (0) target = $region25
  $region24: #{sim2layer_gpr_forward.2} parent=0 // pred_region
    _
  $region25: #{sim2layer_gpr_forward.2} parent=0 // pred_fallthru
    _
  %v26 = vld [vmem:[%s1] sm:$0xf]
  %v27 = vld [vmem:[%s1 + $0x4] sm:$0xf]
  %v28 = vld [vmem:[%s1 + $0x8] sm:$0xf]
  %v29 = vld [vmem:[%s1 + $0xc] sm:$0xf]
  %v30 = vld [vmem:[%s1 + $0x10] sm:$0xf]
  %v31 = vld [vmem:[%s1 + $0x14] sm:$0xf]
  %v32 = vld [vmem:[%s1 + $0x18] sm:$0xf]
  %v33 = vld [vmem:[%s1 + $0x1c] sm:$0xf]
  %v34 = vld [vmem:[%s1 + $0x20] sm:$0xf]
  %v35 = vld [vmem:[%s1 + $0x24] sm:$0xf]
  %v36 = vld [vmem:[%s1 + $0x28] sm:$0xf]
  %v37 = vld [vmem:[%s1 + $0x2c] sm:$0xf]
  %v38 = vld [vmem:[%s1 + $0x30] sm:$0xf]
  %v39 = vld [vmem:[%s1 + $0x34] sm:$0xf]
  %v40 = vld [vmem:[%s1 + $0x38] sm:$0xf]
  %v41 = vld [vmem:[%s1 + $0x3c] sm:$0xf]
  %v42 = vld [vmem:[%s2] sm:$0xf]
  %v43 = vld [vmem:[%s2 + $0x4] sm:$0xf]
  %v44 = vld [vmem:[%s2 + $0x8] sm:$0xf]
  %v45 = vld [vmem:[%s2 + $0xc] sm:$0xf]
  %v46 = vld [vmem:[%s2 + $0x10] sm:$0xf]
  %v47 = vld [vmem:[%s2 + $0x14] sm:$0xf]
  %v48 = vld [vmem:[%s2 + $0x18] sm:$0xf]
  %v49 = vld [vmem:[%s2 + $0x1c] sm:$0xf]
  %v50 = vld [vmem:[%s2 + $0x20] sm:$0xf]
  %v51 = vld [vmem:[%s2 + $0x24] sm:$0xf]
  %v52 = vld [vmem:[%s2 + $0x28] sm:$0xf]
  %v53 = vld [vmem:[%s2 + $0x2c] sm:$0xf]
  %v54 = vld [vmem:[%s2 + $0x30] sm:$0xf]
  %v55 = vld [vmem:[%s2 + $0x34] sm:$0xf]
  %v56 = vld [vmem:[%s2 + $0x38] sm:$0xf]
  %v57 = vld [vmem:[%s2 + $0x3c] sm:$0xf]
  %v58 = vld [vmem:[%s3] sm:$0x1]
  %v60 = vperm.slane %v58, 0
  %v78 = vunpack.c.l.b16 %v26
  %v79 = vunpack.c.l.b16 %v27
  %v80 = vunpack.c.l.b16 %v28
  %v81 = vunpack.c.l.b16 %v29
  %v82 = vunpack.c.l.b16 %v30
  %v83 = vunpack.c.l.b16 %v31
  %v84 = vunpack.c.l.b16 %v32
  %v85 = vunpack.c.l.b16 %v33
  %v86 = vunpack.c.l.b16 %v34
  %v87 = vunpack.c.l.b16 %v35
  %v88 = vunpack.c.l.b16 %v36
  %v89 = vunpack.c.l.b16 %v37
  %v90 = vunpack.c.l.b16 %v38
  %v91 = vunpack.c.l.b16 %v39
  %v92 = vunpack.c.l.b16 %v40
  %v93 = vunpack.c.l.b16 %v41
  %v94 = vpack.c.b16 %v79, %v78
  %v95 = vpack.c.b16 %v81, %v80
  %v96 = vpack.c.b16 %v83, %v82
  %v97 = vpack.c.b16 %v85, %v84
  %v98 = vpack.c.b16 %v87, %v86
  %v99 = vpack.c.b16 %v89, %v88
  %v100 = vpack.c.b16 %v91, %v90
  %v101 = vpack.c.b16 %v93, %v92
  %v126 = vunpack.c.l.b16 %v42
  %v127 = vunpack.c.l.b16 %v43
  %v128 = vunpack.c.l.b16 %v44
  %v129 = vunpack.c.l.b16 %v45
  %v130 = vunpack.c.l.b16 %v46
  %v131 = vunpack.c.l.b16 %v47
  %v132 = vunpack.c.l.b16 %v48
  %v133 = vunpack.c.l.b16 %v49
  %v134 = vunpack.c.l.b16 %v50
  %v135 = vunpack.c.l.b16 %v51
  %v136 = vunpack.c.l.b16 %v52
  %v137 = vunpack.c.l.b16 %v53
  %v138 = vunpack.c.l.b16 %v54
  %v139 = vunpack.c.l.b16 %v55
  %v140 = vunpack.c.l.b16 %v56
  %v141 = vunpack.c.l.b16 %v57
  %v142 = vpack.c.b16 %v127, %v126
  %v143 = vpack.c.b16 %v129, %v128
  %v144 = vpack.c.b16 %v131, %v130
  %v145 = vpack.c.b16 %v133, %v132
  %v146 = vpack.c.b16 %v135, %v134
  %v147 = vpack.c.b16 %v137, %v136
  %v148 = vpack.c.b16 %v139, %v138
  %v149 = vpack.c.b16 %v141, %v140
  %158 = vmatpush.bf16.msra.mxu0 %v149
  %159 = vmatpush.bf16.msra.mxu0 %v148
  %160 = vmatpush.bf16.msra.mxu0 %v147
  %161 = vmatpush.bf16.msra.mxu0 %v146
  %162 = vmatpush.bf16.msra.mxu0 %v145
  %163 = vmatpush.bf16.msra.mxu0 %v144
  %164 = vmatpush.bf16.msra.mxu0 %v143
  %165 = vmatpush.bf16.msra.mxu0 %v142
  %166 = vmatmul.bf16.gmra.mxu0 %v94
  %v167 = vpop.f32.mrf.mxu0
  %v168 = vadd.f32 %v60, %v167
  %v169 = vpop.f32.mrf.mxu0
  %v170 = vadd.f32 %v60, %v169
  %171 = vmatmul.bf16.gmra.mxu0 %v95
  %v172 = vpop.f32.mrf.mxu0
  %v173 = vadd.f32 %v60, %v172
  %v174 = vpop.f32.mrf.mxu0
  %v175 = vadd.f32 %v60, %v174
  %176 = vmatmul.bf16.gmra.mxu0 %v96
  %v177 = vpop.f32.mrf.mxu0
  %v178 = vadd.f32 %v60, %v177
  %v179 = vpop.f32.mrf.mxu0
  %v180 = vadd.f32 %v60, %v179
  %181 = vmatmul.bf16.gmra.mxu0 %v97
  %v182 = vpop.f32.mrf.mxu0
  %v183 = vadd.f32 %v60, %v182
  %v184 = vpop.f32.mrf.mxu0
  %v185 = vadd.f32 %v60, %v184
  %186 = vmatmul.bf16.gmra.mxu0 %v98
  %v187 = vpop.f32.mrf.mxu0
  %v188 = vadd.f32 %v60, %v187
  %v189 = vpop.f32.mrf.mxu0
  %v190 = vadd.f32 %v60, %v189
  %191 = vmatmul.bf16.gmra.mxu0 %v99
  %v192 = vpop.f32.mrf.mxu0
  %v193 = vadd.f32 %v60, %v192
  %v194 = vpop.f32.mrf.mxu0
  %v195 = vadd.f32 %v60, %v194
  %196 = vmatmul.bf16.gmra.mxu0 %v100
  %v197 = vpop.f32.mrf.mxu0
  %v198 = vadd.f32 %v60, %v197
  %v199 = vpop.f32.mrf.mxu0
  %v200 = vadd.f32 %v60, %v199
  %201 = vmatmul.bf16.gmra.mxu0 %v101
  %v202 = vpop.f32.mrf.mxu0
  %v203 = vadd.f32 %v60, %v202
  %v204 = vpop.f32.mrf.mxu0
  %v205 = vadd.f32 %v60, %v204
  %206 = vdwg.mxu0
  %v207 = vmax.f32 %v168, 0.0
  %v208 = vmax.f32 %v170, 0.0
  %v209 = vmax.f32 %v173, 0.0
  %v210 = vmax.f32 %v175, 0.0
  %v211 = vmax.f32 %v178, 0.0
  %v212 = vmax.f32 %v180, 0.0
  %v213 = vmax.f32 %v183, 0.0
  %v214 = vmax.f32 %v185, 0.0
  %v215 = vmax.f32 %v188, 0.0
  %v216 = vmax.f32 %v190, 0.0
  %v217 = vmax.f32 %v193, 0.0
  %v218 = vmax.f32 %v195, 0.0
  %v219 = vmax.f32 %v198, 0.0
  %v220 = vmax.f32 %v200, 0.0
  %v221 = vmax.f32 %v203, 0.0
  %v222 = vmax.f32 %v205, 0.0
  %v223 = vpack.c.bf16 %v208, %v207
  %v224 = vpack.c.bf16 %v210, %v209
  %v225 = vpack.c.bf16 %v212, %v211
  %v226 = vpack.c.bf16 %v214, %v213
  %v227 = vpack.c.bf16 %v216, %v215
  %v228 = vpack.c.bf16 %v218, %v217
  %v229 = vpack.c.bf16 %v220, %v219
  %v230 = vpack.c.bf16 %v222, %v221
  %v231 = vld [vmem:[%s4] sm:$0xf]
  %v232 = vld [vmem:[%s4 + $0x4] sm:$0xf]
  %v233 = vld [vmem:[%s4 + $0x8] sm:$0xf]
  %v234 = vld [vmem:[%s4 + $0xc] sm:$0xf]
  %v235 = vld [vmem:[%s4 + $0x10] sm:$0xf]
  %v236 = vld [vmem:[%s4 + $0x14] sm:$0xf]
  %v237 = vld [vmem:[%s4 + $0x18] sm:$0xf]
  %v238 = vld [vmem:[%s4 + $0x1c] sm:$0xf]
  %v239 = vld [vmem:[%s4 + $0x20] sm:$0xf]
  %v240 = vld [vmem:[%s4 + $0x24] sm:$0xf]
  %v241 = vld [vmem:[%s4 + $0x28] sm:$0xf]
  %v242 = vld [vmem:[%s4 + $0x2c] sm:$0xf]
  %v243 = vld [vmem:[%s4 + $0x30] sm:$0xf]
  %v244 = vld [vmem:[%s4 + $0x34] sm:$0xf]
  %v245 = vld [vmem:[%s4 + $0x38] sm:$0xf]
  %v246 = vld [vmem:[%s4 + $0x3c] sm:$0xf]
  %v247 = vld [vmem:[%s5] sm:$0x1]
  %v249 = vperm.slane %v247, 0
  %v267 = vunpack.c.l.b16 %v231
  %v268 = vunpack.c.l.b16 %v232
  %v269 = vunpack.c.l.b16 %v233
  %v270 = vunpack.c.l.b16 %v234
  %v271 = vunpack.c.l.b16 %v235
  %v272 = vunpack.c.l.b16 %v236
  %v273 = vunpack.c.l.b16 %v237
  %v274 = vunpack.c.l.b16 %v238
  %v275 = vunpack.c.l.b16 %v239
  %v276 = vunpack.c.l.b16 %v240
  %v277 = vunpack.c.l.b16 %v241
  %v278 = vunpack.c.l.b16 %v242
  %v279 = vunpack.c.l.b16 %v243
  %v280 = vunpack.c.l.b16 %v244
  %v281 = vunpack.c.l.b16 %v245
  %v282 = vunpack.c.l.b16 %v246
  %v283 = vpack.c.b16 %v268, %v267
  %v284 = vpack.c.b16 %v270, %v269
  %v285 = vpack.c.b16 %v272, %v271
  %v286 = vpack.c.b16 %v274, %v273
  %v287 = vpack.c.b16 %v276, %v275
  %v288 = vpack.c.b16 %v278, %v277
  %v289 = vpack.c.b16 %v280, %v279
  %v290 = vpack.c.b16 %v282, %v281
  %299 = vmatpush.bf16.msra.mxu0 %v290
  %300 = vmatpush.bf16.msra.mxu0 %v289
  %301 = vmatpush.bf16.msra.mxu0 %v288
  %302 = vmatpush.bf16.msra.mxu0 %v287
  %303 = vmatpush.bf16.msra.mxu0 %v286
  %304 = vmatpush.bf16.msra.mxu0 %v285
  %305 = vmatpush.bf16.msra.mxu0 %v284
  %306 = vmatpush.bf16.msra.mxu0 %v283
  %307 = vmatmul.bf16.gmra.mxu0 %v223
  %v308 = vpop.f32.mrf.mxu0
  %v309 = vadd.f32 %v249, %v308
  %v310 = vpop.f32.mrf.mxu0
  %v311 = vadd.f32 %v249, %v310
  %312 = vmatmul.bf16.gmra.mxu0 %v224
  %v313 = vpop.f32.mrf.mxu0
  %v314 = vadd.f32 %v249, %v313
  %v315 = vpop.f32.mrf.mxu0
  %v316 = vadd.f32 %v249, %v315
  %317 = vmatmul.bf16.gmra.mxu0 %v225
  %v318 = vpop.f32.mrf.mxu0
  %v319 = vadd.f32 %v249, %v318
  %v320 = vpop.f32.mrf.mxu0
  %v321 = vadd.f32 %v249, %v320
  %322 = vmatmul.bf16.gmra.mxu0 %v226
  %v323 = vpop.f32.mrf.mxu0
  %v324 = vadd.f32 %v249, %v323
  %v325 = vpop.f32.mrf.mxu0
  %v326 = vadd.f32 %v249, %v325
  %327 = vmatmul.bf16.gmra.mxu0 %v227
  %v328 = vpop.f32.mrf.mxu0
  %v329 = vadd.f32 %v249, %v328
  %v330 = vpop.f32.mrf.mxu0
  %v331 = vadd.f32 %v249, %v330
  %332 = vmatmul.bf16.gmra.mxu0 %v228
  %v333 = vpop.f32.mrf.mxu0
  %v334 = vadd.f32 %v249, %v333
  %v335 = vpop.f32.mrf.mxu0
  %v336 = vadd.f32 %v249, %v335
  %337 = vmatmul.bf16.gmra.mxu0 %v229
  %v338 = vpop.f32.mrf.mxu0
  %v339 = vadd.f32 %v249, %v338
  %v340 = vpop.f32.mrf.mxu0
  %v341 = vadd.f32 %v249, %v340
  %342 = vmatmul.bf16.gmra.mxu0 %v230
  %v343 = vpop.f32.mrf.mxu0
  %v344 = vadd.f32 %v249, %v343
  %v345 = vpop.f32.mrf.mxu0
  %v346 = vadd.f32 %v249, %v345
  %347 = vdwg.mxu0
  %v348 = vpack.c.bf16 %v309, %v309
  %v349 = vpack.c.bf16 %v311, %v311
  %v350 = vpack.c.bf16 %v314, %v314
  %v351 = vpack.c.bf16 %v316, %v316
  %v352 = vpack.c.bf16 %v319, %v319
  %v353 = vpack.c.bf16 %v321, %v321
  %v354 = vpack.c.bf16 %v324, %v324
  %v355 = vpack.c.bf16 %v326, %v326
  %v356 = vpack.c.bf16 %v329, %v329
  %v357 = vpack.c.bf16 %v331, %v331
  %v358 = vpack.c.bf16 %v334, %v334
  %v359 = vpack.c.bf16 %v336, %v336
  %v360 = vpack.c.bf16 %v339, %v339
  %v361 = vpack.c.bf16 %v341, %v341
  %v362 = vpack.c.bf16 %v344, %v344
  %v363 = vpack.c.bf16 %v346, %v346
  %364 = vst [vmem:[%s6] sm:$0xf] %v348
  %365 = vst [vmem:[%s6 + $0x4] sm:$0xf] %v349
  %366 = vst [vmem:[%s6 + $0x8] sm:$0xf] %v350
  %367 = vst [vmem:[%s6 + $0xc] sm:$0xf] %v351
  %368 = vst [vmem:[%s6 + $0x10] sm:$0xf] %v352
  %369 = vst [vmem:[%s6 + $0x14] sm:$0xf] %v353
  %370 = vst [vmem:[%s6 + $0x18] sm:$0xf] %v354
  %371 = vst [vmem:[%s6 + $0x1c] sm:$0xf] %v355
  %372 = vst [vmem:[%s6 + $0x20] sm:$0xf] %v356
  %373 = vst [vmem:[%s6 + $0x24] sm:$0xf] %v357
  %374 = vst [vmem:[%s6 + $0x28] sm:$0xf] %v358
  %375 = vst [vmem:[%s6 + $0x2c] sm:$0xf] %v359
  %376 = vst [vmem:[%s6 + $0x30] sm:$0xf] %v360
  %377 = vst [vmem:[%s6 + $0x34] sm:$0xf] %v361
  %378 = vst [vmem:[%s6 + $0x38] sm:$0xf] %v362
  %379 = vst [vmem:[%s6 + $0x3c] sm:$0xf] %v363
  %s380 = sld [smem:[#allocation2]]
  %v381 = vstv %s380
  %v382 = vmul.f32 %v381, %v309
  %v383 = vmul.f32 %v381, %v311
  %v384 = vmul.f32 %v381, %v314
  %v385 = vmul.f32 %v381, %v316
  %v386 = vmul.f32 %v381, %v319
  %v387 = vmul.f32 %v381, %v321
  %v388 = vmul.f32 %v381, %v324
  %v389 = vmul.f32 %v381, %v326
  %v390 = vmul.f32 %v381, %v329
  %v391 = vmul.f32 %v381, %v331
  %v392 = vmul.f32 %v381, %v334
  %v393 = vmul.f32 %v381, %v336
  %v394 = vmul.f32 %v381, %v339
  %v395 = vmul.f32 %v381, %v341
  %v396 = vmul.f32 %v381, %v344
  %v397 = vmul.f32 %v381, %v346
  %398 = vst [vmem:[%s7] sm:$0xff] %v382
  %399 = vst [vmem:[%s7 + $0x8] sm:$0xff] %v383
  %400 = vst [vmem:[%s7 + $0x10] sm:$0xff] %v384
  %401 = vst [vmem:[%s7 + $0x18] sm:$0xff] %v385
  %402 = vst [vmem:[%s7 + $0x20] sm:$0xff] %v386
  %403 = vst [vmem:[%s7 + $0x28] sm:$0xff] %v387
  %404 = vst [vmem:[%s7 + $0x30] sm:$0xff] %v388
  %405 = vst [vmem:[%s7 + $0x38] sm:$0xff] %v389
  %406 = vst [vmem:[%s7 + $0x40] sm:$0xff] %v390
  %407 = vst [vmem:[%s7 + $0x48] sm:$0xff] %v391
  %408 = vst [vmem:[%s7 + $0x50] sm:$0xff] %v392
  %409 = vst [vmem:[%s7 + $0x58] sm:$0xff] %v393
  %410 = vst [vmem:[%s7 + $0x60] sm:$0xff] %v394
  %411 = vst [vmem:[%s7 + $0x68] sm:$0xff] %v395
  %412 = vst [vmem:[%s7 + $0x70] sm:$0xff] %v396
  %413 = vst [vmem:[%s7 + $0x78] sm:$0xff] %v397
  // Predicated region
  $region26: #{sim2layer_gpr_forward.2} parent=0 // pred_check
    _
  $region27: #{sim2layer_gpr_forward.2} parent=0 // pred_check_branch
    %415 = sbr.rel (0) target = $region29
  $region28: #{sim2layer_gpr_forward.2} parent=0 // pred_region
    _
  $region29: #{sim2layer_gpr_forward.2} parent=0 // pred_fallthru
    _
  // Predicated region
  $region30: #{sim2layer_gpr_forward.2} parent=0 // pred_check
    _
  $region31: #{sim2layer_gpr_forward.2} parent=0 // pred_check_branch
    %417 = sbr.rel (0) target = $region33
  $region32: #{sim2layer_gpr_forward.2} parent=0 // pred_region
    _
  $region33: #{sim2layer_gpr_forward.2} parent=0 // pred_fallthru
    _
  // Predicated region
  $region34: #{sim2layer_gpr_forward.2} parent=0 // pred_check
    _
  $region35: #{sim2layer_gpr_forward.2} parent=0 // pred_check_branch
    %419 = sbr.rel (0) target = $region37
  $region36: #{sim2layer_gpr_forward.2} parent=0 // pred_region
    _
  $region37: #{sim2layer_gpr_forward.2} parent=0 // pred_fallthru
    _
  // Predicated region
  $region38: #{sim2layer_gpr_forward.2} parent=0 // pred_check
    _
  $region39: #{sim2layer_gpr_forward.2} parent=0 // pred_check_branch
    %421 = sbr.rel (0) target = $region41
  $region40: #{sim2layer_gpr_forward.2} parent=0 // pred_region
    _
  $region41: #{sim2layer_gpr_forward.2} parent=0 // pred_fallthru
    _

// kernel: sim2layer_gpr_forward.3
$region0: #{sim2layer_gpr_forward.3}
  #allocation0 [shape = 'u32[]', space=smem, size = 0x4, offset = 0x4, fixed_abs, tag = 'smem constant byte address 0x4 - core index']
  #allocation1 [shape = 'u32[72,128]{1,0:T(1,128)}', space=vmem, size = 0x9000, scoped, tag = 'internal scratch']
  #allocation2 [shape = 'bf16[128,128]{1,0:T(8,128)(2,1)}', space=vmem, size = 0x8000, scoped, tag = 'scratch operand']
  #allocation3 [shape = 'f32[128,128]{1,0:T(8,128)}', space=vmem, size = 0x10000, scoped, tag = 'scratch operand']
  %s0 = inlined_call_operand.vmem [shape: f32[4], index: 0, kind: input, shape index: {}]
  %s1 = inlined_call_operand.vmem [shape: bf16[128,128], index: 1, kind: input, shape index: {}]
  %s2 = inlined_call_operand.vmem [shape: bf16[128,128], index: 2, kind: input, shape index: {}]
  %s3 = inlined_call_operand.vmem [shape: f32[128,128], index: 3, kind: input, shape index: {}]
  %s4 = inlined_call_operand.vmem [shape: f32[128,128], index: 4, kind: output, shape index: {}]
  %s5 = sld [smem:[#allocation0]]
  $region61: #{sim2layer_gpr_forward.3} parent=0
    _
  %s7 = ssub.s32 1, %s5
  %s8 = scalar_select 0, %s7, %s5
  $region1: #{sim2layer_gpr_forward.3} parent=0
    #allocation4 [shape = 'u8[512]{0}', space=smem, size = 0x200, scoped, tag = 'input window, operand 0, single buffered']
    #allocation5 [shape = 's32[2]{0}', space=sflag, size = 0x8, scoped, tag = 'scoped memory for sim2layer_gpr_forward.3']
    %9 = vsyncpa [#allocation5], 0
    loop: start=0, step=1, limit=5
    $region2: #{sim2layer_gpr_forward.3} parent=1 // loop_pre_header
      _
    $region3: #{sim2layer_gpr_forward.3} parent=1 // loop_header
      %s11 = sphi 0, %s15
      %p12 = scmp.ge.s32.totalorder %s11, 5
      %s19 = sphi 0, %s19
      %s21 = sphi 0, %s19
      %s22 = sphi 0, %s21
      %s36 = sphi 0, %s22
      %s40 = sphi 0, %s40
      %s42 = sphi 0, %s40
      %s43 = sphi 0, %s42
      %s57 = sphi 0, %s43
      %s61 = sphi 0, %s61
      %s63 = sphi 0, %s61
      %s64 = sphi 0, %s63
      %s78 = sphi 0, %s64
      %s82 = sphi 0, %s82
      %s84 = sphi 0, %s82
      %s85 = sphi 0, %s84
      %s99 = sphi 0, %s85
      %s103 = sphi 0, %s103
      %s105 = sphi 0, %s103
      %s106 = sphi 0, %s105
      %s120 = sphi 0, %s106
    $region4: #{sim2layer_gpr_forward.3} parent=1 // loop_header_branch
      %14 = sbr.rel (%p12) target = $region8
    $region5: #{sim2layer_gpr_forward.3} parent=1 // loop_body
      %s16 = ssub.s32 %s11, 1
      %s17 = ssub.s32 %s11, 2
      %s18 = sadd.s32 %s11, 1
      %s20 = sadd.s32 %s19, 1
      %p23 = scmp.eq.s32.totalorder %s11, 2
      %p24 = scmp.ne.s32.totalorder %s19, %s21
      %p25 = scmp.eq.s32.totalorder %s11, 0
      %p26 = por %p24, %p25
      %p27 = scmp.ne.s32.totalorder %s19, %s21
      %p28 = scmp.eq.s32.totalorder %s16, 2
      %p29 = por %p27, %p28
      %p30 = scmp.ne.s32.totalorder %s21, %s22
      %p31 = scmp.eq.s32.totalorder %s16, 0
      %p32 = por %p30, %p31
      %p33 = scmp.ne.s32.totalorder %s21, %s22
      %p34 = scmp.eq.s32.totalorder %s17, 2
      %p35 = por %p33, %p34
      %p37 = scmp.ne.s32.totalorder %s22, %s36
      %p38 = scmp.eq.s32.totalorder %s17, 0
      %p39 = por %p37, %p38
      %s41 = sadd.s32 %s40, 1
      %p44 = scmp.eq.s32.totalorder %s11, 2
      %p45 = scmp.ne.s32.totalorder %s40, %s42
      %p46 = scmp.eq.s32.totalorder %s11, 0
      %p47 = por %p45, %p46
      %p48 = scmp.ne.s32.totalorder %s40, %s42
      %p49 = scmp.eq.s32.totalorder %s16, 2
      %p50 = por %p48, %p49
      %p51 = scmp.ne.s32.totalorder %s42, %s43
      %p52 = scmp.eq.s32.totalorder %s16, 0
      %p53 = por %p51, %p52
      %p54 = scmp.ne.s32.totalorder %s42, %s43
      %p55 = scmp.eq.s32.totalorder %s17, 2
      %p56 = por %p54, %p55
      %p58 = scmp.ne.s32.totalorder %s43, %s57
      %p59 = scmp.eq.s32.totalorder %s17, 0
      %p60 = por %p58, %p59
      %s62 = sadd.s32 %s61, 1
      %p65 = scmp.eq.s32.totalorder %s11, 2
      %p66 = scmp.ne.s32.totalorder %s61, %s63
      %p67 = scmp.eq.s32.totalorder %s11, 0
      %p68 = por %p66, %p67
      %p69 = scmp.ne.s32.totalorder %s61, %s63
      %p70 = scmp.eq.s32.totalorder %s16, 2
      %p71 = por %p69, %p70
      %p72 = scmp.ne.s32.totalorder %s63, %s64
      %p73 = scmp.eq.s32.totalorder %s16, 0
      %p74 = por %p72, %p73
      %p75 = scmp.ne.s32.totalorder %s63, %s64
      %p76 = scmp.eq.s32.totalorder %s17, 2
      %p77 = por %p75, %p76
      %p79 = scmp.ne.s32.totalorder %s64, %s78
      %p80 = scmp.eq.s32.totalorder %s17, 0
      %p81 = por %p79, %p80
      %s83 = sadd.s32 %s82, 1
      %p86 = scmp.eq.s32.totalorder %s11, 2
      %p87 = scmp.ne.s32.totalorder %s82, %s84
      %p88 = scmp.eq.s32.totalorder %s11, 0
      %p89 = por %p87, %p88
      %p90 = scmp.ne.s32.totalorder %s82, %s84
      %p91 = scmp.eq.s32.totalorder %s16, 2
      %p92 = por %p90, %p91
      %p93 = scmp.ne.s32.totalorder %s84, %s85
      %p94 = scmp.eq.s32.totalorder %s16, 0
      %p95 = por %p93, %p94
      %p96 = scmp.ne.s32.totalorder %s84, %s85
      %p97 = scmp.eq.s32.totalorder %s17, 2
      %p98 = por %p96, %p97
      %p100 = scmp.ne.s32.totalorder %s85, %s99
      %p101 = scmp.eq.s32.totalorder %s17, 0
      %p102 = por %p100, %p101
      %s104 = sadd.s32 %s103, 1
      %p107 = scmp.eq.s32.totalorder %s11, 2
      %p108 = scmp.ne.s32.totalorder %s103, %s105
      %p109 = scmp.eq.s32.totalorder %s11, 0
      %p110 = por %p108, %p109
      %p111 = scmp.ne.s32.totalorder %s103, %s105
      %p112 = scmp.eq.s32.totalorder %s16, 2
      %p113 = por %p111, %p112
      %p114 = scmp.ne.s32.totalorder %s105, %s106
      %p115 = scmp.eq.s32.totalorder %s16, 0
      %p116 = por %p114, %p115
      %p117 = scmp.ne.s32.totalorder %s105, %s106
      %p118 = scmp.eq.s32.totalorder %s17, 2
      %p119 = por %p117, %p118
      %p121 = scmp.ne.s32.totalorder %s106, %s120
      %p122 = scmp.eq.s32.totalorder %s17, 0
      %p123 = por %p121, %p122
      %p124 = scmp.le.s32.totalorder 1, %s11
      %p125 = scmp.lt.s32.totalorder %s11, 4
      %p126 = pnand %p124, %p125
      %p127 = pneg %p126
      // Predicated region
      $region9: #{sim2layer_gpr_forward.3} parent=5 // pred_check
        _
      $region10: #{sim2layer_gpr_forward.3} parent=5 // pred_check_branch
        %129 = sbr.rel (%p126) target = $region12
      $region11: #{sim2layer_gpr_forward.3} parent=5 // pred_region
        %s130 = ssub.s32 %s11, 1
        // Predicated region
        $region13: #{sim2layer_gpr_forward.3} parent=11 // pred_check
          %p131 = pneg %p32
        $region14: #{sim2layer_gpr_forward.3} parent=11 // pred_check_branch
          %133 = sbr.rel (%p131) target = $region16
        $region15: #{sim2layer_gpr_forward.3} parent=11 // pred_region
          %135 = vsyncadd [#allocation5], 0
          %s137 = sshll.u32 %s0, 4
          %s138 = int_to_ptr.vmem [resolvable:$true] %s137
          %140 = dma.vmem_to_smem %s138, 16, [#allocation4], [#allocation5]
        $region16: #{sim2layer_gpr_forward.3} parent=11 // pred_fallthru
          _
        // Predicated region
        $region17: #{sim2layer_gpr_forward.3} parent=11 // pred_check
          %p141 = pneg %p53
        $region18: #{sim2layer_gpr_forward.3} parent=11 // pred_check_branch
          %143 = sbr.rel (%p141) target = $region20
        $region19: #{sim2layer_gpr_forward.3} parent=11 // pred_region
          _
        $region20: #{sim2layer_gpr_forward.3} parent=11 // pred_fallthru
          _
        // Predicated region
        $region21: #{sim2layer_gpr_forward.3} parent=11 // pred_check
          %p144 = pneg %p74
        $region22: #{sim2layer_gpr_forward.3} parent=11 // pred_check_branch
          %146 = sbr.rel (%p144) target = $region24
        $region23: #{sim2layer_gpr_forward.3} parent=11 // pred_region
          _
        $region24: #{sim2layer_gpr_forward.3} parent=11 // pred_fallthru
          _
        // Predicated region
        $region25: #{sim2layer_gpr_forward.3} parent=11 // pred_check
          %p147 = pneg %p95
        $region26: #{sim2layer_gpr_forward.3} parent=11 // pred_check_branch
          %149 = sbr.rel (%p147) target = $region28
        $region27: #{sim2layer_gpr_forward.3} parent=11 // pred_region
          _
        $region28: #{sim2layer_gpr_forward.3} parent=11 // pred_fallthru
          _
      $region12: #{sim2layer_gpr_forward.3} parent=5 // pred_fallthru
        _
      %p150 = scmp.lt.s32.totalorder %s11, 3
      // Predicated region
      $region29: #{sim2layer_gpr_forward.3} parent=5 // pred_check
        %p151 = pneg %p150
      $region30: #{sim2layer_gpr_forward.3} parent=5 // pred_check_branch
        %153 = sbr.rel (%p151) target = $region32
      $region31: #{sim2layer_gpr_forward.3} parent=5 // pred_region
        _
      $region32: #{sim2layer_gpr_forward.3} parent=5 // pred_fallthru
        _
      %p154 = scmp.le.s32.totalorder 1, %s11
      %p155 = scmp.lt.s32.totalorder %s11, 4
      %p156 = pnand %p154, %p155
      %p157 = pneg %p156
      // Predicated region
      $region33: #{sim2layer_gpr_forward.3} parent=5 // pred_check
        _
      $region34: #{sim2layer_gpr_forward.3} parent=5 // pred_check_branch
        %159 = sbr.rel (%p156) target = $region36
      $region35: #{sim2layer_gpr_forward.3} parent=5 // pred_region
        %s160 = ssub.s32 %s11, 1
        // Predicated region
        $region37: #{sim2layer_gpr_forward.3} parent=35 // pred_check
          %p161 = pneg %p32
        $region38: #{sim2layer_gpr_forward.3} parent=35 // pred_check_branch
          %163 = sbr.rel (%p161) target = $region40
        $region39: #{sim2layer_gpr_forward.3} parent=35 // pred_region
          %165 = dma.done [#allocation5], 16
        $region40: #{sim2layer_gpr_forward.3} parent=35 // pred_fallthru
          _
        %166 = sfence
        %p167 = pneg %p32
        %p168 = pneg %p29
        %p169 = pneg %p53
        %p170 = pneg %p50
        %p171 = pneg %p74
        %p172 = pneg %p71
        %p173 = pneg %p95
        %p174 = pneg %p92
        %p175 = pneg %p116
        %p176 = pneg %p113
        %p177 = scmp.eq.s32.totalorder %s16, 0
        // Predicated region
        $region41: #{sim2layer_gpr_forward.3} parent=35 // pred_check
          %p178 = pneg %p177
        $region42: #{sim2layer_gpr_forward.3} parent=35 // pred_check_branch
          %180 = sbr.rel (%p178) target = $region44
        $region43: #{sim2layer_gpr_forward.3} parent=35 // pred_region
          %v181 = vld [vmem:[%s2] sm:$0xf]
          %v182 = vld [vmem:[%s2 + $0x4] sm:$0xf]
          %v183 = vld [vmem:[%s2 + $0x8] sm:$0xf]
          %v184 = vld [vmem:[%s2 + $0xc] sm:$0xf]
          %v185 = vld [vmem:[%s2 + $0x10] sm:$0xf]
          %v186 = vld [vmem:[%s2 + $0x14] sm:$0xf]
          %v187 = vld [vmem:[%s2 + $0x18] sm:$0xf]
          %v188 = vld [vmem:[%s2 + $0x1c] sm:$0xf]
          %v189 = vld [vmem:[%s2 + $0x20] sm:$0xf]
          %v190 = vld [vmem:[%s2 + $0x24] sm:$0xf]
          %v191 = vld [vmem:[%s2 + $0x28] sm:$0xf]
          %v192 = vld [vmem:[%s2 + $0x2c] sm:$0xf]
          %v193 = vld [vmem:[%s2 + $0x30] sm:$0xf]
          %v194 = vld [vmem:[%s2 + $0x34] sm:$0xf]
          %v195 = vld [vmem:[%s2 + $0x38] sm:$0xf]
          %v196 = vld [vmem:[%s2 + $0x3c] sm:$0xf]
          %197 = vst [vmem:[#allocation2] sm:$0xf] %v181
          %198 = vst [vmem:[#allocation2 + $0x4] sm:$0xf] %v182
          %199 = vst [vmem:[#allocation2 + $0x8] sm:$0xf] %v183
          %200 = vst [vmem:[#allocation2 + $0xc] sm:$0xf] %v184
          %201 = vst [vmem:[#allocation2 + $0x10] sm:$0xf] %v185
          %202 = vst [vmem:[#allocation2 + $0x14] sm:$0xf] %v186
          %203 = vst [vmem:[#allocation2 + $0x18] sm:$0xf] %v187
          %204 = vst [vmem:[#allocation2 + $0x1c] sm:$0xf] %v188
          %205 = vst [vmem:[#allocation2 + $0x20] sm:$0xf] %v189
          %206 = vst [vmem:[#allocation2 + $0x24] sm:$0xf] %v190
          %207 = vst [vmem:[#allocation2 + $0x28] sm:$0xf] %v191
          %208 = vst [vmem:[#allocation2 + $0x2c] sm:$0xf] %v192
          %209 = vst [vmem:[#allocation2 + $0x30] sm:$0xf] %v193
          %210 = vst [vmem:[#allocation2 + $0x34] sm:$0xf] %v194
          %211 = vst [vmem:[#allocation2 + $0x38] sm:$0xf] %v195
          %212 = vst [vmem:[#allocation2 + $0x3c] sm:$0xf] %v196
          %v213 = vld [vmem:[%s3] sm:$0xff]
          %v214 = vld [vmem:[%s3 + $0x8] sm:$0xff]
          %v215 = vld [vmem:[%s3 + $0x10] sm:$0xff]
          %v216 = vld [vmem:[%s3 + $0x18] sm:$0xff]
          %v217 = vld [vmem:[%s3 + $0x20] sm:$0xff]
          %v218 = vld [vmem:[%s3 + $0x28] sm:$0xff]
          %v219 = vld [vmem:[%s3 + $0x30] sm:$0xff]
          %v220 = vld [vmem:[%s3 + $0x38] sm:$0xff]
          %v221 = vld [vmem:[%s3 + $0x40] sm:$0xff]
          %v222 = vld [vmem:[%s3 + $0x48] sm:$0xff]
          %v223 = vld [vmem:[%s3 + $0x50] sm:$0xff]
          %v224 = vld [vmem:[%s3 + $0x58] sm:$0xff]
          %v225 = vld [vmem:[%s3 + $0x60] sm:$0xff]
          %v226 = vld [vmem:[%s3 + $0x68] sm:$0xff]
          %v227 = vld [vmem:[%s3 + $0x70] sm:$0xff]
          %v228 = vld [vmem:[%s3 + $0x78] sm:$0xff]
          %229 = vst [vmem:[#allocation3] sm:$0xff] %v213
          %230 = vst [vmem:[#allocation3 + $0x8] sm:$0xff] %v214
          %231 = vst [vmem:[#allocation3 + $0x10] sm:$0xff] %v215
          %232 = vst [vmem:[#allocation3 + $0x18] sm:$0xff] %v216
          %233 = vst [vmem:[#allocation3 + $0x20] sm:$0xff] %v217
          %234 = vst [vmem:[#allocation3 + $0x28] sm:$0xff] %v218
          %235 = vst [vmem:[#allocation3 + $0x30] sm:$0xff] %v219
          %236 = vst [vmem:[#allocation3 + $0x38] sm:$0xff] %v220
          %237 = vst [vmem:[#allocation3 + $0x40] sm:$0xff] %v221
          %238 = vst [vmem:[#allocation3 + $0x48] sm:$0xff] %v222
          %239 = vst [vmem:[#allocation3 + $0x50] sm:$0xff] %v223
          %240 = vst [vmem:[#allocation3 + $0x58] sm:$0xff] %v224
          %241 = vst [vmem:[#allocation3 + $0x60] sm:$0xff] %v225
          %242 = vst [vmem:[#allocation3 + $0x68] sm:$0xff] %v226
          %243 = vst [vmem:[#allocation3 + $0x70] sm:$0xff] %v227
          %244 = vst [vmem:[#allocation3 + $0x78] sm:$0xff] %v228
        $region44: #{sim2layer_gpr_forward.3} parent=35 // pred_fallthru
          _
        %v245 = vld [vmem:[%s1] sm:$0xf]
        %v246 = vld [vmem:[%s1 + $0x4] sm:$0xf]
        %v247 = vld [vmem:[%s1 + $0x8] sm:$0xf]
        %v248 = vld [vmem:[%s1 + $0xc] sm:$0xf]
        %v249 = vld [vmem:[%s1 + $0x10] sm:$0xf]
        %v250 = vld [vmem:[%s1 + $0x14] sm:$0xf]
        %v251 = vld [vmem:[%s1 + $0x18] sm:$0xf]
        %v252 = vld [vmem:[%s1 + $0x1c] sm:$0xf]
        %v253 = vld [vmem:[%s1 + $0x20] sm:$0xf]
        %v254 = vld [vmem:[%s1 + $0x24] sm:$0xf]
        %v255 = vld [vmem:[%s1 + $0x28] sm:$0xf]
        %v256 = vld [vmem:[%s1 + $0x2c] sm:$0xf]
        %v257 = vld [vmem:[%s1 + $0x30] sm:$0xf]
        %v258 = vld [vmem:[%s1 + $0x34] sm:$0xf]
        %v259 = vld [vmem:[%s1 + $0x38] sm:$0xf]
        %v260 = vld [vmem:[%s1 + $0x3c] sm:$0xf]
        %v261 = vld [vmem:[#allocation2] sm:$0xf]
        %v262 = vld [vmem:[#allocation2 + $0x4] sm:$0xf]
        %v263 = vld [vmem:[#allocation2 + $0x8] sm:$0xf]
        %v264 = vld [vmem:[#allocation2 + $0xc] sm:$0xf]
        %v265 = vld [vmem:[#allocation2 + $0x10] sm:$0xf]
        %v266 = vld [vmem:[#allocation2 + $0x14] sm:$0xf]
        %v267 = vld [vmem:[#allocation2 + $0x18] sm:$0xf]
        %v268 = vld [vmem:[#allocation2 + $0x1c] sm:$0xf]
        %v269 = vld [vmem:[#allocation2 + $0x20] sm:$0xf]
        %v270 = vld [vmem:[#allocation2 + $0x24] sm:$0xf]
        %v271 = vld [vmem:[#allocation2 + $0x28] sm:$0xf]
        %v272 = vld [vmem:[#allocation2 + $0x2c] sm:$0xf]
        %v273 = vld [vmem:[#allocation2 + $0x30] sm:$0xf]
        %v274 = vld [vmem:[#allocation2 + $0x34] sm:$0xf]
        %v275 = vld [vmem:[#allocation2 + $0x38] sm:$0xf]
        %v276 = vld [vmem:[#allocation2 + $0x3c] sm:$0xf]
        %v293 = vunpack.c.l.b16 %v245
        %v294 = vunpack.c.l.b16 %v246
        %v295 = vunpack.c.l.b16 %v247
        %v296 = vunpack.c.l.b16 %v248
        %v297 = vunpack.c.l.b16 %v249
        %v298 = vunpack.c.l.b16 %v250
        %v299 = vunpack.c.l.b16 %v251
        %v300 = vunpack.c.l.b16 %v252
        %v301 = vunpack.c.l.b16 %v253
        %v302 = vunpack.c.l.b16 %v254
        %v303 = vunpack.c.l.b16 %v255
        %v304 = vunpack.c.l.b16 %v256
        %v305 = vunpack.c.l.b16 %v257
        %v306 = vunpack.c.l.b16 %v258
        %v307 = vunpack.c.l.b16 %v259
        %v308 = vunpack.c.l.b16 %v260
        %v309 = vpack.c.b16 %v294, %v293
        %v310 = vpack.c.b16 %v296, %v295
        %v311 = vpack.c.b16 %v298, %v297
        %v312 = vpack.c.b16 %v300, %v299
        %v313 = vpack.c.b16 %v302, %v301
        %v314 = vpack.c.b16 %v304, %v303
        %v315 = vpack.c.b16 %v306, %v305
        %v316 = vpack.c.b16 %v308, %v307
        %v341 = vunpack.c.l.b16 %v261
        %v342 = vunpack.c.l.b16 %v262
        %v343 = vunpack.c.l.b16 %v263
        %v344 = vunpack.c.l.b16 %v264
        %v345 = vunpack.c.l.b16 %v265
        %v346 = vunpack.c.l.b16 %v266
        %v347 = vunpack.c.l.b16 %v267
        %v348 = vunpack.c.l.b16 %v268
        %v349 = vunpack.c.l.b16 %v269
        %v350 = vunpack.c.l.b16 %v270
        %v351 = vunpack.c.l.b16 %v271
        %v352 = vunpack.c.l.b16 %v272
        %v353 = vunpack.c.l.b16 %v273
        %v354 = vunpack.c.l.b16 %v274
        %v355 = vunpack.c.l.b16 %v275
        %v356 = vunpack.c.l.b16 %v276
        %v357 = vpack.c.b16 %v342, %v341
        %v358 = vpack.c.b16 %v344, %v343
        %v359 = vpack.c.b16 %v346, %v345
        %v360 = vpack.c.b16 %v348, %v347
        %v361 = vpack.c.b16 %v350, %v349
        %v362 = vpack.c.b16 %v352, %v351
        %v363 = vpack.c.b16 %v354, %v353
        %v364 = vpack.c.b16 %v356, %v355
        %373 = vmatpush.bf16.msra.mxu0 %v364
        %374 = vmatpush.bf16.msra.mxu0 %v363
        %375 = vmatpush.bf16.msra.mxu0 %v362
        %376 = vmatpush.bf16.msra.mxu0 %v361
        %377 = vmatpush.bf16.msra.mxu0 %v360
        %378 = vmatpush.bf16.msra.mxu0 %v359
        %379 = vmatpush.bf16.msra.mxu0 %v358
        %380 = vmatpush.bf16.msra.mxu0 %v357
        %381 = vmatmul.bf16.gmra.mxu0 %v309
        %v382 = vpop.f32.mrf.mxu0
        %v383 = vadd.f32 0.0, %v382
        %v384 = vpop.f32.mrf.mxu0
        %v385 = vadd.f32 0.0, %v384
        %386 = vmatmul.bf16.gmra.mxu0 %v310
        %v387 = vpop.f32.mrf.mxu0
        %v388 = vadd.f32 0.0, %v387
        %v389 = vpop.f32.mrf.mxu0
        %v390 = vadd.f32 0.0, %v389
        %391 = vmatmul.bf16.gmra.mxu0 %v311
        %v392 = vpop.f32.mrf.mxu0
        %v393 = vadd.f32 0.0, %v392
        %v394 = vpop.f32.mrf.mxu0
        %v395 = vadd.f32 0.0, %v394
        %396 = vmatmul.bf16.gmra.mxu0 %v312
        %v397 = vpop.f32.mrf.mxu0
        %v398 = vadd.f32 0.0, %v397
        %v399 = vpop.f32.mrf.mxu0
        %v400 = vadd.f32 0.0, %v399
        %401 = vmatmul.bf16.gmra.mxu0 %v313
        %v402 = vpop.f32.mrf.mxu0
        %v403 = vadd.f32 0.0, %v402
        %v404 = vpop.f32.mrf.mxu0
        %v405 = vadd.f32 0.0, %v404
        %406 = vmatmul.bf16.gmra.mxu0 %v314
        %v407 = vpop.f32.mrf.mxu0
        %v408 = vadd.f32 0.0, %v407
        %v409 = vpop.f32.mrf.mxu0
        %v410 = vadd.f32 0.0, %v409
        %411 = vmatmul.bf16.gmra.mxu0 %v315
        %v412 = vpop.f32.mrf.mxu0
        %v413 = vadd.f32 0.0, %v412
        %v414 = vpop.f32.mrf.mxu0
        %v415 = vadd.f32 0.0, %v414
        %416 = vmatmul.bf16.gmra.mxu0 %v316
        %v417 = vpop.f32.mrf.mxu0
        %v418 = vadd.f32 0.0, %v417
        %v419 = vpop.f32.mrf.mxu0
        %v420 = vadd.f32 0.0, %v419
        %421 = vdwg.mxu0
        %v422 = vld [vmem:[#allocation3] sm:$0xff]
        %v423 = vld [vmem:[#allocation3 + $0x8] sm:$0xff]
        %v424 = vld [vmem:[#allocation3 + $0x10] sm:$0xff]
        %v425 = vld [vmem:[#allocation3 + $0x18] sm:$0xff]
        %v426 = vld [vmem:[#allocation3 + $0x20] sm:$0xff]
        %v427 = vld [vmem:[#allocation3 + $0x28] sm:$0xff]
        %v428 = vld [vmem:[#allocation3 + $0x30] sm:$0xff]
        %v429 = vld [vmem:[#allocation3 + $0x38] sm:$0xff]
        %v430 = vld [vmem:[#allocation3 + $0x40] sm:$0xff]
        %v431 = vld [vmem:[#allocation3 + $0x48] sm:$0xff]
        %v432 = vld [vmem:[#allocation3 + $0x50] sm:$0xff]
        %v433 = vld [vmem:[#allocation3 + $0x58] sm:$0xff]
        %v434 = vld [vmem:[#allocation3 + $0x60] sm:$0xff]
        %v435 = vld [vmem:[#allocation3 + $0x68] sm:$0xff]
        %v436 = vld [vmem:[#allocation3 + $0x70] sm:$0xff]
        %v437 = vld [vmem:[#allocation3 + $0x78] sm:$0xff]
        %s438 = sadd.s32 %s16, 1
        %s439 = sld [smem:[#allocation4 + %s438]]
        %v440 = vstv %s439
        %v441 = vmul.f32 %v440, %v383
        %v442 = vmul.f32 %v440, %v385
        %v443 = vmul.f32 %v440, %v388
        %v444 = vmul.f32 %v440, %v390
        %v445 = vmul.f32 %v440, %v393
        %v446 = vmul.f32 %v440, %v395
        %v447 = vmul.f32 %v440, %v398
        %v448 = vmul.f32 %v440, %v400
        %v449 = vmul.f32 %v440, %v403
        %v450 = vmul.f32 %v440, %v405
        %v451 = vmul.f32 %v440, %v408
        %v452 = vmul.f32 %v440, %v410
        %v453 = vmul.f32 %v440, %v413
        %v454 = vmul.f32 %v440, %v415
        %v455 = vmul.f32 %v440, %v418
        %v456 = vmul.f32 %v440, %v420
        %v457 = vadd.f32 %v422, %v441
        %v458 = vadd.f32 %v423, %v442
        %v459 = vadd.f32 %v424, %v443
        %v460 = vadd.f32 %v425, %v444
        %v461 = vadd.f32 %v426, %v445
        %v462 = vadd.f32 %v427, %v446
        %v463 = vadd.f32 %v428, %v447
        %v464 = vadd.f32 %v429, %v448
        %v465 = vadd.f32 %v430, %v449
        %v466 = vadd.f32 %v431, %v450
        %v467 = vadd.f32 %v432, %v451
        %v468 = vadd.f32 %v433, %v452
        %v469 = vadd.f32 %v434, %v453
        %v470 = vadd.f32 %v435, %v454
        %v471 = vadd.f32 %v436, %v455
        %v472 = vadd.f32 %v437, %v456
        %473 = vst [vmem:[#allocation3] sm:$0xff] %v457
        %474 = vst [vmem:[#allocation3 + $0x8] sm:$0xff] %v458
        %475 = vst [vmem:[#allocation3 + $0x10] sm:$0xff] %v459
        %476 = vst [vmem:[#allocation3 + $0x18] sm:$0xff] %v460
        %477 = vst [vmem:[#allocation3 + $0x20] sm:$0xff] %v461
        %478 = vst [vmem:[#allocation3 + $0x28] sm:$0xff] %v462
        %479 = vst [vmem:[#allocation3 + $0x30] sm:$0xff] %v463
        %480 = vst [vmem:[#allocation3 + $0x38] sm:$0xff] %v464
        %481 = vst [vmem:[#allocation3 + $0x40] sm:$0xff] %v465
        %482 = vst [vmem:[#allocation3 + $0x48] sm:$0xff] %v466
        %483 = vst [vmem:[#allocation3 + $0x50] sm:$0xff] %v467
        %484 = vst [vmem:[#allocation3 + $0x58] sm:$0xff] %v468
        %485 = vst [vmem:[#allocation3 + $0x60] sm:$0xff] %v469
        %486 = vst [vmem:[#allocation3 + $0x68] sm:$0xff] %v470
        %487 = vst [vmem:[#allocation3 + $0x70] sm:$0xff] %v471
        %488 = vst [vmem:[#allocation3 + $0x78] sm:$0xff] %v472
        %v489 = vpack.c.bf16 %v383, %v383
        %v490 = vpack.c.bf16 %v385, %v385
        %v491 = vpack.c.bf16 %v388, %v388
        %v492 = vpack.c.bf16 %v390, %v390
        %v493 = vpack.c.bf16 %v393, %v393
        %v494 = vpack.c.bf16 %v395, %v395
        %v495 = vpack.c.bf16 %v398, %v398
        %v496 = vpack.c.bf16 %v400, %v400
        %v497 = vpack.c.bf16 %v403, %v403
        %v498 = vpack.c.bf16 %v405, %v405
        %v499 = vpack.c.bf16 %v408, %v408
        %v500 = vpack.c.bf16 %v410, %v410
        %v501 = vpack.c.bf16 %v413, %v413
        %v502 = vpack.c.bf16 %v415, %v415
        %v503 = vpack.c.bf16 %v418, %v418
        %v504 = vpack.c.bf16 %v420, %v420
        %505 = vst [vmem:[#allocation2] sm:$0xf] %v489
        %506 = vst [vmem:[#allocation2 + $0x4] sm:$0xf] %v490
        %507 = vst [vmem:[#allocation2 + $0x8] sm:$0xf] %v491
        %508 = vst [vmem:[#allocation2 + $0xc] sm:$0xf] %v492
        %509 = vst [vmem:[#allocation2 + $0x10] sm:$0xf] %v493
        %510 = vst [vmem:[#allocation2 + $0x14] sm:$0xf] %v494
        %511 = vst [vmem:[#allocation2 + $0x18] sm:$0xf] %v495
        %512 = vst [vmem:[#allocation2 + $0x1c] sm:$0xf] %v496
        %513 = vst [vmem:[#allocation2 + $0x20] sm:$0xf] %v497
        %514 = vst [vmem:[#allocation2 + $0x24] sm:$0xf] %v498
        %515 = vst [vmem:[#allocation2 + $0x28] sm:$0xf] %v499
        %516 = vst [vmem:[#allocation2 + $0x2c] sm:$0xf] %v500
        %517 = vst [vmem:[#allocation2 + $0x30] sm:$0xf] %v501
        %518 = vst [vmem:[#allocation2 + $0x34] sm:$0xf] %v502
        %519 = vst [vmem:[#allocation2 + $0x38] sm:$0xf] %v503
        %520 = vst [vmem:[#allocation2 + $0x3c] sm:$0xf] %v504
        %p521 = scmp.eq.s32.totalorder %s16, 2
        // Predicated region
        $region45: #{sim2layer_gpr_forward.3} parent=35 // pred_check
          %p522 = pneg %p521
        $region46: #{sim2layer_gpr_forward.3} parent=35 // pred_check_branch
          %524 = sbr.rel (%p522) target = $region48
        $region47: #{sim2layer_gpr_forward.3} parent=35 // pred_region
          %v525 = vld [vmem:[#allocation3] sm:$0xff]
          %v526 = vld [vmem:[#allocation3 + $0x8] sm:$0xff]
          %v527 = vld [vmem:[#allocation3 + $0x10] sm:$0xff]
          %v528 = vld [vmem:[#allocation3 + $0x18] sm:$0xff]
          %v529 = vld [vmem:[#allocation3 + $0x20] sm:$0xff]
          %v530 = vld [vmem:[#allocation3 + $0x28] sm:$0xff]
          %v531 = vld [vmem:[#allocation3 + $0x30] sm:$0xff]
          %v532 = vld [vmem:[#allocation3 + $0x38] sm:$0xff]
          %v533 = vld [vmem:[#allocation3 + $0x40] sm:$0xff]
          %v534 = vld [vmem:[#allocation3 + $0x48] sm:$0xff]
          %v535 = vld [vmem:[#allocation3 + $0x50] sm:$0xff]
          %v536 = vld [vmem:[#allocation3 + $0x58] sm:$0xff]
          %v537 = vld [vmem:[#allocation3 + $0x60] sm:$0xff]
          %v538 = vld [vmem:[#allocation3 + $0x68] sm:$0xff]
          %v539 = vld [vmem:[#allocation3 + $0x70] sm:$0xff]
          %v540 = vld [vmem:[#allocation3 + $0x78] sm:$0xff]
          %541 = vst [vmem:[%s4] sm:$0xff] %v525
          %542 = vst [vmem:[%s4 + $0x8] sm:$0xff] %v526
          %543 = vst [vmem:[%s4 + $0x10] sm:$0xff] %v527
          %544 = vst [vmem:[%s4 + $0x18] sm:$0xff] %v528
          %545 = vst [vmem:[%s4 + $0x20] sm:$0xff] %v529
          %546 = vst [vmem:[%s4 + $0x28] sm:$0xff] %v530
          %547 = vst [vmem:[%s4 + $0x30] sm:$0xff] %v531
          %548 = vst [vmem:[%s4 + $0x38] sm:$0xff] %v532
          %549 = vst [vmem:[%s4 + $0x40] sm:$0xff] %v533
          %550 = vst [vmem:[%s4 + $0x48] sm:$0xff] %v534
          %551 = vst [vmem:[%s4 + $0x50] sm:$0xff] %v535
          %552 = vst [vmem:[%s4 + $0x58] sm:$0xff] %v536
          %553 = vst [vmem:[%s4 + $0x60] sm:$0xff] %v537
          %554 = vst [vmem:[%s4 + $0x68] sm:$0xff] %v538
          %555 = vst [vmem:[%s4 + $0x70] sm:$0xff] %v539
          %556 = vst [vmem:[%s4 + $0x78] sm:$0xff] %v540
        $region48: #{sim2layer_gpr_forward.3} parent=35 // pred_fallthru
          _
        // Predicated region
        $region49: #{sim2layer_gpr_forward.3} parent=35 // pred_check
          %p557 = pneg %p113
        $region50: #{sim2layer_gpr_forward.3} parent=35 // pred_check_branch
          %559 = sbr.rel (%p557) target = $region52
        $region51: #{sim2layer_gpr_forward.3} parent=35 // pred_region
          _
        $region52: #{sim2layer_gpr_forward.3} parent=35 // pred_fallthru
          _
        // Predicated region
        $region53: #{sim2layer_gpr_forward.3} parent=35 // pred_check
          %p560 = pneg %p113
        $region54: #{sim2layer_gpr_forward.3} parent=35 // pred_check_branch
          %562 = sbr.rel (%p560) target = $region56
        $region55: #{sim2layer_gpr_forward.3} parent=35 // pred_region
          _
        $region56: #{sim2layer_gpr_forward.3} parent=35 // pred_fallthru
          _
      $region36: #{sim2layer_gpr_forward.3} parent=5 // pred_fallthru
        _
      %p563 = scmp.le.s32.totalorder 2, %s11
      // Predicated region
      $region57: #{sim2layer_gpr_forward.3} parent=5 // pred_check
        %p564 = pneg %p563
      $region58: #{sim2layer_gpr_forward.3} parent=5 // pred_check_branch
        %566 = sbr.rel (%p564) target = $region60
      $region59: #{sim2layer_gpr_forward.3} parent=5 // pred_region
        %s567 = ssub.s32 %s11, 2
      $region60: #{sim2layer_gpr_forward.3} parent=5 // pred_fallthru
        _
    $region6: #{sim2layer_gpr_forward.3} parent=1 // loop_footer
      %s15 = sadd.s32 1, %s11
    $region7: #{sim2layer_gpr_forward.3} parent=1 // loop_footer_branch
      %10 = sbr.rel target = $region3
    $region8: #{sim2layer_gpr_forward.3} parent=1 // loop_exit
      _
    %568 = vsyncpa [#allocation5], 1
    %s569 = scalar_lea.sflag [#allocation5], 1
    %570 = vsyncpa %s569, 1

</llo_original>
